<compile_context>
chip_gen: v7x
topology: tpu7x:2x2x1
jax: 0.10.0
libtpu: 0.0.40
codegen_flags: <defaults>
</compile_context>

<pallas_src>
import functools

import jax
import jax.numpy as jnp
from jax.experimental import pallas as pl
from jax.experimental.pallas import tpu as pltpu


def _vae_forward_kernel(x_ref, w1_ref, b1_ref, wh_ref, bh_ref,
                        logits_ref, mu_ref, logstd_ref, *, latent_dim):
    # ---- encoder: Linear(input_height -> hidden) + ReLU --------------------
    # input_height (K) is tiny (2): do broadcast FMAs on the VPU instead of
    # pushing a K=2 matmul through the MXU.
    x = x_ref[...]                                  # [TB, K]
    w1 = w1_ref[...]                                # [K, hidden]
    K = x.shape[1]
    h = x[:, 0:1] * w1[0:1, :]                      # [TB, hidden]
    for k in range(1, K):                           # static unroll (K == 2)
        h = h + x[:, k:k + 1] * w1[k:k + 1, :]
    h = h + b1_ref[...]                             # [1, hidden] broadcast
    logits = jnp.maximum(h, 0.0)
    logits_ref[...] = logits

    # ---- fused latent heads: one MXU matmul for mu | logstd ---------------
    heads = jnp.dot(logits, wh_ref[...],
                    preferred_element_type=jnp.float32) + bh_ref[...]  # [TB, 2*latent]
    mu_ref[...] = heads[:, :latent_dim]
    # 0.5 factor already folded into the logstd half of wh/bh at prep time.
    logstd_ref[...] = jnp.exp(heads[:, latent_dim:])


def prepare_params(params):
    """One-time parameter prep (do NOT call per forward):
    - transpose torch-layout [out, in] weights to [in, out]
    - fuse mu/logstd heads into one [hidden, 2*latent] weight / [1, 2*latent] bias
    - fold the /2 of the logstd head into its weights and bias."""
    hidden = params["w1"].shape[0]
    latent = params["w_mu"].shape[0]
    w1 = jnp.asarray(params["w1"]).T                          # [in, hidden]
    b1 = jnp.asarray(params["b1"]).reshape(1, hidden)
    w_heads = jnp.concatenate(
        [jnp.asarray(params["w_mu"]).T,
         jnp.asarray(params["w_logstd"]).T * 0.5], axis=1)    # [hidden, 2*latent]
    b_heads = jnp.concatenate(
        [jnp.asarray(params["b_mu"]),
         jnp.asarray(params["b_logstd"]) * 0.5]).reshape(1, 2 * latent)
    return {"w1": w1, "b1": b1, "w_heads": w_heads, "b_heads": b_heads,
            "latent_dim": latent}


def vae_forward(x, prep, *, block_rows=512):
    """x: [B, input_height] float32; prep: output of prepare_params()."""
    B, in_dim = x.shape
    hidden = prep["w1"].shape[1]
    latent = int(prep["latent_dim"])

    # Batch tile: whole batch if small; otherwise a pipelined row tile.
    if B <= block_rows:
        tb = B
    else:
        tb = block_rows
        assert B % tb == 0, "pad batch to a multiple of block_rows"
        assert tb % 8 == 0
    grid = (B // tb,)

    kernel = functools.partial(_vae_forward_kernel, latent_dim=latent)

    def batched(feat):
        return pl.BlockSpec((tb, feat), lambda i: (i, 0))

    def full(shape):
        return pl.BlockSpec(shape, lambda i: (0, 0))

    logits, mu, logstd = pl.pallas_call(
        kernel,
        out_shape=(
            jax.ShapeDtypeStruct((B, hidden), jnp.float32),
            jax.ShapeDtypeStruct((B, latent), jnp.float32),
            jax.ShapeDtypeStruct((B, latent), jnp.float32),
        ),
        grid=grid,
        in_specs=[
            batched(in_dim),                 # x
            full((in_dim, hidden)),          # w1
            full((1, hidden)),               # b1
            full((hidden, 2 * latent)),      # fused head weights
            full((1, 2 * latent)),           # fused head bias
        ],
        out_specs=(batched(hidden), batched(latent), batched(latent)),
        compiler_params=pltpu.CompilerParams(
            dimension_semantics=("parallel",)),
    )(x, prep["w1"], prep["b1"], prep["w_heads"], prep["b_heads"])
    return logits, mu, logstd


def init_params(key, input_height=2, hidden_layers=128, latent_dim=2):
    """Deterministic param init mimicking nn.Linear default (uniform +-1/sqrt(fan_in))."""
    ks = jax.random.split(key, 6)

    def lin(kw, kb, fan_in, fan_out):
        bound = 1.0 / jnp.sqrt(fan_in)
        w = jax.random.uniform(kw, (fan_out, fan_in), jnp.float32, -bound, bound)
        b = jax.random.uniform(kb, (fan_out,), jnp.float32, -bound, bound)
        return w, b

    w1, b1 = lin(ks[0], ks[1], input_height, hidden_layers)
    w_mu, b_mu = lin(ks[2], ks[3], hidden_layers, latent_dim)
    w_ls, b_ls = lin(ks[4], ks[5], hidden_layers, latent_dim)
    return {"w1": w1, "b1": b1,
            "w_mu": w_mu, "b_mu": b_mu,
            "w_logstd": w_ls, "b_logstd": b_ls}


def reference_forward(x, params):
    logits = jnp.maximum(x @ params["w1"].T + params["b1"], 0.0)
    mu = logits @ params["w_mu"].T + params["b_mu"]
    logstd = jnp.exp((logits @ params["w_logstd"].T + params["b_logstd"]) / 2.0)
    return logits, mu, logstd


if __name__ == "__main__":
    key = jax.random.PRNGKey(0)
    k_param, k_x = jax.random.split(key)

    B, input_height, hidden, latent = 8, 2, 128, 2
    params = init_params(k_param, input_height, hidden, latent)
    prep = prepare_params(params)          # one-time hoist of transposes / head fusion
    x = jax.random.normal(k_x, (B, input_height), jnp.float32)

    logits, mu, logstd = vae_forward(x, prep)
    jax.block_until_ready((logits, mu, logstd))

    # correctness check against pure-JAX reference
    r_logits, r_mu, r_logstd = reference_forward(x, params)
    assert jnp.allclose(logits, r_logits, atol=1e-5, rtol=1e-5)
    assert jnp.allclose(mu, r_mu, atol=1e-5, rtol=1e-5)
    assert jnp.allclose(logstd, r_logstd, atol=1e-5, rtol=1e-5)

    print("KERNEL_OK")
</pallas_src>

<mosaic_0001>
module attributes {stable_mosaic.version = 11 : i64} {
  func.func @_vae_forward_kernel(%arg0: i32, %arg1: memref<8x2xf32, #tpu.memory_space<vmem>>, %arg2: memref<2x128xf32, #tpu.memory_space<vmem>>, %arg3: memref<1x128xf32, #tpu.memory_space<vmem>>, %arg4: memref<128x4xf32, #tpu.memory_space<vmem>>, %arg5: memref<1x4xf32, #tpu.memory_space<vmem>>, %arg6: memref<8x128xf32, #tpu.memory_space<vmem>>, %arg7: memref<8x2xf32, #tpu.memory_space<vmem>>, %arg8: memref<8x2xf32, #tpu.memory_space<vmem>>) attributes {dimension_semantics = [#tpu.dimension_semantics<parallel>], iteration_bounds = array<i64: 1>, scalar_prefetch = 0 : i64, scratch_operands = 0 : i64, tpu.core_type = #tpu.core_type<tc>, window_params = [{transform_indices = @transform_0, window_bounds = array<i64: 8, 2>}, {pipeline_mode = #tpu.pipeline_mode<synchronous>, transform_indices = @transform_1, window_bounds = array<i64: 2, 128>}, {pipeline_mode = #tpu.pipeline_mode<synchronous>, transform_indices = @transform_2, window_bounds = array<i64: 1, 128>}, {pipeline_mode = #tpu.pipeline_mode<synchronous>, transform_indices = @transform_3, window_bounds = array<i64: 128, 4>}, {pipeline_mode = #tpu.pipeline_mode<synchronous>, transform_indices = @transform_4, window_bounds = array<i64: 1, 4>}, {transform_indices = @transform_5, window_bounds = array<i64: 8, 128>}, {transform_indices = @transform_6, window_bounds = array<i64: 8, 2>}, {transform_indices = @transform_7, window_bounds = array<i64: 8, 2>}]} {
    %c0 = arith.constant 0 : index
    %c0_0 = arith.constant 0 : index
    %0 = vector.load %arg1[%c0, %c0_0] : memref<8x2xf32, #tpu.memory_space<vmem>>, vector<8x2xf32>
    %c0_1 = arith.constant 0 : index
    %c0_2 = arith.constant 0 : index
    %1 = vector.load %arg2[%c0_1, %c0_2] : memref<2x128xf32, #tpu.memory_space<vmem>>, vector<2x128xf32>
    %2 = vector.extract_strided_slice %0 {offsets = [0, 0], sizes = [8, 1], strides = [1, 1]} : vector<8x2xf32> to vector<8x1xf32>
    %3 = vector.extract_strided_slice %1 {offsets = [0, 0], sizes = [1, 128], strides = [1, 1]} : vector<2x128xf32> to vector<1x128xf32>
    %4 = vector.broadcast %2 : vector<8x1xf32> to vector<8x128xf32>
    %5 = vector.broadcast %3 : vector<1x128xf32> to vector<8x128xf32>
    %6 = arith.mulf %4, %5 : vector<8x128xf32>
    %7 = vector.extract_strided_slice %0 {offsets = [0, 1], sizes = [8, 1], strides = [1, 1]} : vector<8x2xf32> to vector<8x1xf32>
    %8 = vector.extract_strided_slice %1 {offsets = [1, 0], sizes = [1, 128], strides = [1, 1]} : vector<2x128xf32> to vector<1x128xf32>
    %9 = vector.broadcast %7 : vector<8x1xf32> to vector<8x128xf32>
    %10 = vector.broadcast %8 : vector<1x128xf32> to vector<8x128xf32>
    %11 = arith.mulf %9, %10 : vector<8x128xf32>
    %12 = arith.addf %6, %11 : vector<8x128xf32>
    %c0_3 = arith.constant 0 : index
    %c0_4 = arith.constant 0 : index
    %13 = vector.load %arg3[%c0_3, %c0_4] : memref<1x128xf32, #tpu.memory_space<vmem>>, vector<1x128xf32>
    %14 = vector.broadcast %13 : vector<1x128xf32> to vector<8x128xf32>
    %15 = arith.addf %12, %14 : vector<8x128xf32>
    %cst = arith.constant 0.000000e+00 : f32
    %16 = vector.broadcast %cst : f32 to vector<8x128xf32>
    %17 = arith.maximumf %15, %16 : vector<8x128xf32>
    %c0_5 = arith.constant 0 : index
    %c0_6 = arith.constant 0 : index
    %18 = vector.load %arg6[%c0_5, %c0_6] : memref<8x128xf32, #tpu.memory_space<vmem>>, vector<8x128xf32>
    tpu.vector_store %arg6[%c0_5, %c0_6], %17 {strides = array<i32>} : memref<8x128xf32, #tpu.memory_space<vmem>>, vector<8x128xf32>,
    %c0_7 = arith.constant 0 : index
    %c0_8 = arith.constant 0 : index
    %19 = vector.load %arg4[%c0_7, %c0_8] : memref<128x4xf32, #tpu.memory_space<vmem>>, vector<128x4xf32>
    %cst_9 = arith.constant dense<0.000000e+00> : vector<8x4xf32>
    %20 = tpu.matmul %17, %19, %cst_9 {dimension_numbers = #tpu.dot_dimension_numbers<[1], [0], [0], [1], [0, 0, 1, 1], [], []>} : vector<8x128xf32>, vector<128x4xf32>, vector<8x4xf32> -> vector<8x4xf32>
    %c0_10 = arith.constant 0 : index
    %c0_11 = arith.constant 0 : index
    %21 = vector.load %arg5[%c0_10, %c0_11] : memref<1x4xf32, #tpu.memory_space<vmem>>, vector<1x4xf32>
    %22 = vector.broadcast %21 : vector<1x4xf32> to vector<8x4xf32>
    %23 = arith.addf %20, %22 : vector<8x4xf32>
    %24 = vector.extract_strided_slice %23 {offsets = [0, 0], sizes = [8, 2], strides = [1, 1]} : vector<8x4xf32> to vector<8x2xf32>
    %c0_12 = arith.constant 0 : index
    %c0_13 = arith.constant 0 : index
    %25 = vector.load %arg7[%c0_12, %c0_13] : memref<8x2xf32, #tpu.memory_space<vmem>>, vector<8x2xf32>
    tpu.vector_store %arg7[%c0_12, %c0_13], %24 {strides = array<i32>} : memref<8x2xf32, #tpu.memory_space<vmem>>, vector<8x2xf32>,
    %26 = vector.extract_strided_slice %23 {offsets = [0, 2], sizes = [8, 2], strides = [1, 1]} : vector<8x4xf32> to vector<8x2xf32>
    %27 = math.exp %26 : vector<8x2xf32>
    %c0_14 = arith.constant 0 : index
    %c0_15 = arith.constant 0 : index
    %28 = vector.load %arg8[%c0_14, %c0_15] : memref<8x2xf32, #tpu.memory_space<vmem>>, vector<8x2xf32>
    tpu.vector_store %arg8[%c0_14, %c0_15], %27 {strides = array<i32>} : memref<8x2xf32, #tpu.memory_space<vmem>>, vector<8x2xf32>,
    return
  }
  func.func @transform_0(%arg0: i32) -> (i32, i32) {
    %c0_i32 = arith.constant 0 : i32
    %c0_i32_0 = arith.constant 0 : i32
    return %arg0, %c0_i32 : i32, i32
  }
  func.func @transform_1(%arg0: i32) -> (i32, i32) {
    %c0_i32 = arith.constant 0 : i32
    %c0_i32_0 = arith.constant 0 : i32
    %c0_i32_1 = arith.constant 0 : i32
    return %c0_i32, %c0_i32_0 : i32, i32
  }
  func.func @transform_2(%arg0: i32) -> (i32, i32) {
    %c0_i32 = arith.constant 0 : i32
    %c0_i32_0 = arith.constant 0 : i32
    %c0_i32_1 = arith.constant 0 : i32
    return %c0_i32, %c0_i32_0 : i32, i32
  }
  func.func @transform_3(%arg0: i32) -> (i32, i32) {
    %c0_i32 = arith.constant 0 : i32
    %c0_i32_0 = arith.constant 0 : i32
    %c0_i32_1 = arith.constant 0 : i32
    return %c0_i32, %c0_i32_0 : i32, i32
  }
  func.func @transform_4(%arg0: i32) -> (i32, i32) {
    %c0_i32 = arith.constant 0 : i32
    %c0_i32_0 = arith.constant 0 : i32
    %c0_i32_1 = arith.constant 0 : i32
    return %c0_i32, %c0_i32_0 : i32, i32
  }
  func.func @transform_5(%arg0: i32) -> (i32, i32) {
    %c0_i32 = arith.constant 0 : i32
    %c0_i32_0 = arith.constant 0 : i32
    return %arg0, %c0_i32 : i32, i32
  }
  func.func @transform_6(%arg0: i32) -> (i32, i32) {
    %c0_i32 = arith.constant 0 : i32
    %c0_i32_0 = arith.constant 0 : i32
    return %arg0, %c0_i32 : i32, i32
  }
  func.func @transform_7(%arg0: i32) -> (i32, i32) {
    %c0_i32 = arith.constant 0 : i32
    %c0_i32_0 = arith.constant 0 : i32
    return %arg0, %c0_i32 : i32, i32
  }
}

</mosaic_0001>

<llo_original>
// kernel: tpu_custom_call.1
$region0: #{tpu_custom_call.1}
  #allocation0 [shape = 'u32[]', space=smem, size = 0x4, offset = 0x4, fixed_abs, tag = 'smem constant byte address 0x4 - core index']
  #allocation1 [shape = 'u32[144,128]{1,0:T(1,128)}', space=vmem, size = 0x12000, scoped, tag = 'internal scratch']
  %s0 = inlined_call_operand.vmem [shape: f32[8,2], index: 0, kind: input, shape index: {}]
  %s1 = inlined_call_operand.vmem [shape: f32[2,128], index: 1, kind: input, shape index: {}]
  %s2 = inlined_call_operand.vmem [shape: f32[1,128], index: 2, kind: input, shape index: {}]
  %s3 = inlined_call_operand.vmem [shape: f32[128,4], index: 3, kind: input, shape index: {}]
  %s4 = inlined_call_operand.vmem [shape: f32[1,4], index: 4, kind: input, shape index: {}]
  %s5 = inlined_call_operand.hbm [shape: f32[8,128], index: 5, kind: output, shape index: {0}]
  %s6 = inlined_call_operand.vmem [shape: f32[8,2], index: 6, kind: output, shape index: {1}]
  %s7 = inlined_call_operand.vmem [shape: f32[8,2], index: 7, kind: output, shape index: {2}]
  %8 = xla_tuple %s5, %s6, %s7
  %s9 = sld [smem:[#allocation0]]
  $region46: #{tpu_custom_call.1} parent=0
    _
  %s11 = ssub.s32 1, %s9
  %s12 = scalar_select 0, %s11, %s9
  $region1: #{tpu_custom_call.1} parent=0
    #allocation2 [shape = 'u8[4096]{0}', space=vmem, size = 0x1000, scoped, tag = 'output window, operand 0, single buffered']
    #allocation3 [shape = 's32[1]{0}', space=sflag, size = 0x4, scoped, tag = 'scoped memory for tpu_custom_call.1']
    %13 = vsyncpa [#allocation3], 0
    // Predicated region
    $region2: #{tpu_custom_call.1} parent=1 // pred_check
      _
    $region3: #{tpu_custom_call.1} parent=1 // pred_check_branch
      %15 = sbr.rel (0) target = $region5
    $region4: #{tpu_custom_call.1} parent=1 // pred_region
      _
    $region5: #{tpu_custom_call.1} parent=1 // pred_fallthru
      _
    // Predicated region
    $region6: #{tpu_custom_call.1} parent=1 // pred_check
      _
    $region7: #{tpu_custom_call.1} parent=1 // pred_check_branch
      %17 = sbr.rel (0) target = $region9
    $region8: #{tpu_custom_call.1} parent=1 // pred_region
      _
    $region9: #{tpu_custom_call.1} parent=1 // pred_fallthru
      _
    // Predicated region
    $region10: #{tpu_custom_call.1} parent=1 // pred_check
      _
    $region11: #{tpu_custom_call.1} parent=1 // pred_check_branch
      %19 = sbr.rel (0) target = $region13
    $region12: #{tpu_custom_call.1} parent=1 // pred_region
      _
    $region13: #{tpu_custom_call.1} parent=1 // pred_fallthru
      _
    // Predicated region
    $region14: #{tpu_custom_call.1} parent=1 // pred_check
      _
    $region15: #{tpu_custom_call.1} parent=1 // pred_check_branch
      %21 = sbr.rel (0) target = $region17
    $region16: #{tpu_custom_call.1} parent=1 // pred_region
      _
    $region17: #{tpu_custom_call.1} parent=1 // pred_fallthru
      _
    // Predicated region
    $region18: #{tpu_custom_call.1} parent=1 // pred_check
      _
    $region19: #{tpu_custom_call.1} parent=1 // pred_check_branch
      %23 = sbr.rel (0) target = $region21
    $region20: #{tpu_custom_call.1} parent=1 // pred_region
      _
    $region21: #{tpu_custom_call.1} parent=1 // pred_fallthru
      _
    %v24 = vld [vmem:[%s0] sm:$0xff]
    %v25 = vld [vmem:[%s1] sm:$0x3]
    %27 = vset.pattern.permute.xlu0 0
    %28 = vperm.xlu0 %27, %v24
    %v29 = vpop.permute.xlu0 %28
    %v31 = vlaneseq
    %v32 = vshrl.u32 %v31, 7
    %v33 = vsub.s32 0, %v32
    %v34 = vrot.slane %v25, %v33
    %v35 = vmul.f32 %v29, %v34
    %36 = vset.pattern.permute.xlu0 1
    %37 = vperm.xlu0 %36, %v24
    %v38 = vpop.permute.xlu0 %37
    %v40 = vlaneseq
    %v41 = vshrl.u32 %v40, 7
    %v42 = vsub.s32 1, %v41
    %v43 = vrot.slane %v25, %v42
    %v44 = vmul.f32 %v38, %v43
    %v45 = vadd.f32 %v35, %v44
    %v46 = vld [vmem:[%s2] sm:$0x1]
    %v48 = vlaneseq
    %v49 = vshrl.u32 %v48, 7
    %v50 = vsub.s32 0, %v49
    %v51 = vrot.slane %v46, %v50
    %v53 = vadd.f32 %v45, %v51
    %v54 = vmax.f32 %v53, 0.0
    %55 = vst [vmem:[#allocation2] sm:$0xff] %v54
    %v56 = vld [vmem:[%s3] sm:$0xff]
    %v57 = vld [vmem:[%s3 + $0x8] sm:$0xff]
    %v58 = vld [vmem:[%s3 + $0x10] sm:$0xff]
    %v59 = vld [vmem:[%s3 + $0x18] sm:$0xff]
    %v60 = vld [vmem:[%s3 + $0x20] sm:$0xff]
    %v61 = vld [vmem:[%s3 + $0x28] sm:$0xff]
    %v62 = vld [vmem:[%s3 + $0x30] sm:$0xff]
    %v63 = vld [vmem:[%s3 + $0x38] sm:$0xff]
    %v64 = vld [vmem:[%s3 + $0x40] sm:$0xff]
    %v65 = vld [vmem:[%s3 + $0x48] sm:$0xff]
    %v66 = vld [vmem:[%s3 + $0x50] sm:$0xff]
    %v67 = vld [vmem:[%s3 + $0x58] sm:$0xff]
    %v68 = vld [vmem:[%s3 + $0x60] sm:$0xff]
    %v69 = vld [vmem:[%s3 + $0x68] sm:$0xff]
    %v70 = vld [vmem:[%s3 + $0x70] sm:$0xff]
    %v71 = vld [vmem:[%s3 + $0x78] sm:$0xff]
    %v72 = vld [vmem:[%s4] sm:$0x1]
    %v74 = vlaneseq
    %v75 = vshrl.u32 %v74, 7
    %v76 = vsub.s32 0, %v75
    %v77 = vrot.slane %v72, %v76
    %79 = vmatprep.subr.mxu0 0.0
    %80 = vmatpush1.msra.mxu0 %v56
    %81 = vmatprep.subr.mxu0 0.0
    %82 = vmatpush1.msra.mxu0 %v57
    %83 = vmatprep.subr.mxu0 0.0
    %84 = vmatpush1.msra.mxu0 %v58
    %85 = vmatprep.subr.mxu0 0.0
    %86 = vmatpush1.msra.mxu0 %v59
    %87 = vmatprep.subr.mxu0 0.0
    %88 = vmatpush1.msra.mxu0 %v60
    %89 = vmatprep.subr.mxu0 0.0
    %90 = vmatpush1.msra.mxu0 %v61
    %91 = vmatprep.subr.mxu0 0.0
    %92 = vmatpush1.msra.mxu0 %v62
    %93 = vmatprep.subr.mxu0 0.0
    %94 = vmatpush1.msra.mxu0 %v63
    %95 = vmatprep.subr.mxu0 0.0
    %96 = vmatpush1.msra.mxu0 %v64
    %97 = vmatprep.subr.mxu0 0.0
    %98 = vmatpush1.msra.mxu0 %v65
    %99 = vmatprep.subr.mxu0 0.0
    %100 = vmatpush1.msra.mxu0 %v66
    %101 = vmatprep.subr.mxu0 0.0
    %102 = vmatpush1.msra.mxu0 %v67
    %103 = vmatprep.subr.mxu0 0.0
    %104 = vmatpush1.msra.mxu0 %v68
    %105 = vmatprep.subr.mxu0 0.0
    %106 = vmatpush1.msra.mxu0 %v69
    %107 = vmatprep.subr.mxu0 0.0
    %108 = vmatpush1.msra.mxu0 %v70
    %109 = vmatprep.subr.mxu0 0.0
    %110 = vmatpush1.msra.mxu0 %v71
    %111 = vmatprep.subr.mxu0 0.0
    %112 = vmatpush1.msra.mxu0 0.0
    %113 = vmatprep.subr.mxu0 0.0
    %114 = vmatpush1.msra.mxu0 0.0
    %115 = vmatprep.subr.mxu0 0.0
    %116 = vmatpush1.msra.mxu0 0.0
    %117 = vmatprep.subr.mxu0 0.0
    %118 = vmatpush1.msra.mxu0 0.0
    %119 = vmatprep.subr.mxu0 0.0
    %120 = vmatpush1.msra.mxu0 0.0
    %121 = vmatprep.subr.mxu0 0.0
    %122 = vmatpush1.msra.mxu0 0.0
    %123 = vmatprep.subr.mxu0 0.0
    %124 = vmatpush1.msra.mxu0 0.0
    %125 = vmatprep.subr.mxu0 0.0
    %126 = vmatpush1.msra.mxu0 0.0
    %127 = vmatprep.subr.mxu0 0.0
    %128 = vmatpush1.msra.mxu0 0.0
    %129 = vmatprep.subr.mxu0 0.0
    %130 = vmatpush1.msra.mxu0 0.0
    %131 = vmatprep.subr.mxu0 0.0
    %132 = vmatpush1.msra.mxu0 0.0
    %133 = vmatprep.subr.mxu0 0.0
    %134 = vmatpush1.msra.mxu0 0.0
    %135 = vmatprep.subr.mxu0 0.0
    %136 = vmatpush1.msra.mxu0 0.0
    %137 = vmatprep.subr.mxu0 0.0
    %138 = vmatpush1.msra.mxu0 0.0
    %139 = vmatprep.subr.mxu0 0.0
    %140 = vmatpush1.msra.mxu0 0.0
    %141 = vmatprep.subr.mxu0 0.0
    %142 = vmatpush1.msra.mxu0 0.0
    %143 = vmatprep.mubr.f32.mxu0 0.0
    %144 = vmatmul.mubr.f32.gmra.mrb[0].mxu0 %v54
    %v145 = vpop.f32.mrb[0].mxu0
    %v146 = vadd.f32 %v77, %v145
    %v147 = vpop.f32.mrb[0].mxu0
    %148 = vdwg.mxu0
    %vm149 = vcmask 15360
    %150 = vst.msk [vmem:[%s6] sm:$0xff] %vm149, %v146
    %v151 = vmul.f32 %v146, 1.442695
    %v152 = vpow.pop %v151
    %154 = vrot.lane.b32.xlu0 %v152, 126
    %v155 = vpop.permute.xlu0 %154
    %157 = vst.msk [vmem:[%s7] sm:$0xff] %vm149, %v155
    // Predicated region
    $region22: #{tpu_custom_call.1} parent=1 // pred_check
      _
    $region23: #{tpu_custom_call.1} parent=1 // pred_check_branch
      %159 = sbr.rel (0) target = $region25
    $region24: #{tpu_custom_call.1} parent=1 // pred_region
      %s161 = ssub.s32 128, 128
      %162 = vsyncadd [#allocation3], %s161
      %s164 = sshll.u32 [#allocation2], 4
      %s165 = int_to_ptr.vmem [resolvable:$true] %s164
      %167 = dma.vmem_to_hbm [thread:$0]  %s165, 128, %s5, [#allocation3]
    $region25: #{tpu_custom_call.1} parent=1 // pred_fallthru
      _
    // Predicated region
    $region26: #{tpu_custom_call.1} parent=1 // pred_check
      _
    $region27: #{tpu_custom_call.1} parent=1 // pred_check_branch
      %169 = sbr.rel (0) target = $region29
    $region28: #{tpu_custom_call.1} parent=1 // pred_region
      _
    $region29: #{tpu_custom_call.1} parent=1 // pred_fallthru
      _
    // Predicated region
    $region30: #{tpu_custom_call.1} parent=1 // pred_check
      _
    $region31: #{tpu_custom_call.1} parent=1 // pred_check_branch
      %171 = sbr.rel (0) target = $region33
    $region32: #{tpu_custom_call.1} parent=1 // pred_region
      _
    $region33: #{tpu_custom_call.1} parent=1 // pred_fallthru
      _
    // Predicated region
    $region34: #{tpu_custom_call.1} parent=1 // pred_check
      _
    $region35: #{tpu_custom_call.1} parent=1 // pred_check_branch
      %173 = sbr.rel (0) target = $region37
    $region36: #{tpu_custom_call.1} parent=1 // pred_region
      %174 = dma.done [#allocation3], 128
    $region37: #{tpu_custom_call.1} parent=1 // pred_fallthru
      _
    // Predicated region
    $region38: #{tpu_custom_call.1} parent=1 // pred_check
      _
    $region39: #{tpu_custom_call.1} parent=1 // pred_check_branch
      %176 = sbr.rel (0) target = $region41
    $region40: #{tpu_custom_call.1} parent=1 // pred_region
      _
    $region41: #{tpu_custom_call.1} parent=1 // pred_fallthru
      _
    // Predicated region
    $region42: #{tpu_custom_call.1} parent=1 // pred_check
      _
    $region43: #{tpu_custom_call.1} parent=1 // pred_check_branch
      %178 = sbr.rel (0) target = $region45
    $region44: #{tpu_custom_call.1} parent=1 // pred_region
      _
    $region45: #{tpu_custom_call.1} parent=1 // pred_fallthru
      _
    %179 = vsyncpa [#allocation3], 1

</llo_original>
